<compile_context>
chip_gen: v6e
topology: v6e:2x2x1
jax: 0.10.0
libtpu: 0.0.40
codegen_flags: <defaults>
</compile_context>

<pallas_src>
import math

import jax
import jax.numpy as jnp
import numpy as np
from jax.experimental import pallas as pl
from jax.experimental.pallas import tpu as pltpu


_VMEM_LIMIT_BYTES = 48 * 1024 * 1024   # safe on v5e/v6e (128 MiB phys) and v7x (64 MiB phys)
_VMEM_WORK_BUDGET = 36 * 1024 * 1024   # target working set; headroom under the limit
_MAX_ROWS_PER_STEP = 2048              # bb * S per-step row target (review: 1024-2048)


def _attention_kernel(hs_ref, mask_ref, relmask_ref, w_ref, b_ref,
                      ctx_ref, probs_ref):
    bb, s, h = hs_ref.shape

    # One fused [bb*S, H] x [H, 3H+1] MXU pass: Q | K | V | distance-bias column.
    # Q-side columns (and the distance column / bias) are pre-scaled by 1/sqrt(H).
    hs2 = hs_ref[...].reshape(bb * s, h)                                   # bf16
    proj = jnp.dot(hs2, w_ref[...], preferred_element_type=jnp.float32) + b_ref[...]

    q3 = proj[:, 0 * h:1 * h].reshape(bb, s, h).astype(jnp.bfloat16)
    k3 = proj[:, 1 * h:2 * h].reshape(bb, s, h).astype(jnp.bfloat16)
    v3 = proj[:, 2 * h:3 * h].reshape(bb, s, h).astype(jnp.bfloat16)
    dist = proj[:, 3 * h:3 * h + 1].reshape(bb, s, 1)                      # f32 logit bias

    # attention_scores = (Q K^T + dist * (rel == 1)) / sqrt(H) + attention_mask,
    # with the 1/sqrt(H) already folded into Q/dist; no K^T materialized.
    scores = jnp.einsum("bqd,bkd->bqk", q3, k3,
                        preferred_element_type=jnp.float32)                # [bb,S,S] f32
    relm = relmask_ref[...].astype(jnp.float32)                            # int8 {0,1} -> f32
    scores = scores + dist * relm + mask_ref[...]                          # mask [bb,1,S]

    # Softmax over keys (f32 VPU math; reciprocal on the EUP slot).
    # TODO(synk): if a bundle dump on v6e/v7x shows the EUP as the binding unit at
    # large S, compute exp in bf16 there (not on v5e: no bf16 EUP).
    m = jnp.max(scores, axis=-1, keepdims=True)
    e = jnp.exp(scores - m)
    denom = jnp.sum(e, axis=-1, keepdims=True)
    probs = e * pl.reciprocal(denom, approx=True)
    # TODO(synk): attention-prob dropout is identity in eval mode; training-time RNG
    # dropout and the optional head_mask multiply are not implemented.

    ctx = jnp.einsum("bqk,bkd->bqd", probs.astype(jnp.bfloat16), v3,
                     preferred_element_type=jnp.float32)                   # [bb,S,H]

    ctx_ref[...] = ctx.astype(ctx_ref.dtype)
    probs_ref[...] = probs.astype(probs_ref.dtype)


def _estimate_vmem_bytes(bb, S, H, probs_bytes, ctx_bytes):
    """Rough per-step VMEM working set: double-buffered pipelined I/O + live intermediates."""
    rows = bb * S
    w_cols = 3 * H + 1
    io = 2 * (rows * H * 2                 # hidden_states (bf16)
              + bb * S * S * 1             # (rel == 1) mask (int8)
              + bb * S * 4                 # attention mask (f32, [bb,1,S])
              + H * w_cols * 2             # fused weights (bf16)
              + w_cols * 4                 # fused bias (f32)
              + rows * H * ctx_bytes       # context output
              + bb * S * S * probs_bytes)  # probs output
    inter = (rows * w_cols * 4             # fused projection (f32)
             + 3 * rows * H * 2            # q/k/v (bf16)
             + 3 * bb * S * S * 4          # scores / exp / probs (f32)
             + bb * S * S * 2              # probs (bf16) for PV
             + rows * H * 4)               # ctx accumulator (f32)
    return io + inter


def _pick_batch_block(B, S, H, probs_bytes, ctx_bytes):
    """Largest divisor of B that (a) leaves >= 2 grid steps when B >= 2 (v7x 2-TC
    sharding), (b) keeps bb*S within the per-step row target, and (c) fits the VMEM
    working-set budget (derived against v7x's 64 MiB physical VMEM)."""
    max_bb = max(1, B // 2)
    best = 1
    for bb in range(1, max_bb + 1):
        if B % bb:
            continue
        if bb * S > _MAX_ROWS_PER_STEP:
            continue
        if _estimate_vmem_bytes(bb, S, H, probs_bytes, ctx_bytes) > _VMEM_WORK_BUDGET:
            continue
        best = bb
    return best


def bert_self_attention_distance(hidden_states, attention_mask, word_word_relation,
                                 params, *, probs_dtype=jnp.bfloat16,
                                 ctx_dtype=jnp.bfloat16):
    B, S, H = hidden_states.shape
    head_size = H                      # single-head configuration (see fidelity note)
    scale = 1.0 / math.sqrt(head_size)

    probs_bytes = jnp.dtype(probs_dtype).itemsize
    ctx_bytes = jnp.dtype(ctx_dtype).itemsize
    bb = _pick_batch_block(B, S, H, probs_bytes, ctx_bytes)
    grid = (B // bb,)

    # ---- wrapper-side weight folding (one-time, weight-sized work) ----
    wq_t_s = params["wq"].T.astype(jnp.float32) * scale   # 1/sqrt(H) folded into Q side
    bq_s = params["bq"].astype(jnp.float32) * scale
    wk_t = params["wk"].T.astype(jnp.float32)
    wv_t = params["wv"].T.astype(jnp.float32)
    bk = params["bk"].astype(jnp.float32)
    bv = params["bv"].astype(jnp.float32)
    # Only distance row 1 survives the reference's gather * (rel == 1) masking, so the
    # distance term collapses to one extra projection column: dist = q_scaled . Wd[1].
    wd1 = params["distance_weight"][1].astype(jnp.float32)            # [H]
    wd_col = wq_t_s @ wd1                                             # [H]
    b_eff = jnp.dot(bq_s, wd1)                                        # scalar

    w_fused = jnp.concatenate(
        [wq_t_s, wk_t, wv_t, wd_col[:, None]], axis=1).astype(jnp.bfloat16)       # [H, 3H+1]
    b_fused = jnp.concatenate(
        [bq_s, bk, bv, jnp.reshape(b_eff, (1,))]).reshape(1, 3 * H + 1).astype(jnp.float32)

    hs_bf = hidden_states.astype(jnp.bfloat16)
    mask = attention_mask.reshape(B, 1, S).astype(jnp.float32)
    # NOTE: at production scale ship this int8 (rel == 1) mask precomputed upstream so
    # the int32 relation indices never hit HBM at all.
    relmask = (word_word_relation == 1).astype(jnp.int8)

    grid_spec = pltpu.PrefetchScalarGridSpec(
        num_scalar_prefetch=0,
        grid=grid,
        in_specs=[
            pl.BlockSpec((bb, S, H), lambda b: (b, 0, 0)),        # hidden_states (bf16)
            pl.BlockSpec((bb, 1, S), lambda b: (b, 0, 0)),        # attention_mask (f32)
            pl.BlockSpec((bb, S, S), lambda b: (b, 0, 0)),        # (rel == 1) mask (int8)
            pl.BlockSpec((H, 3 * H + 1), lambda b: (0, 0)),       # fused [Wq|Wk|Wv|wd] (bf16)
            pl.BlockSpec((1, 3 * H + 1), lambda b: (0, 0)),       # fused bias (f32)
        ],
        out_specs=(
            pl.BlockSpec((bb, S, H), lambda b: (b, 0, 0)),        # context_layer
            pl.BlockSpec((bb, S, S), lambda b: (b, 0, 0)),        # attention_probs
        ),
    )

    ctx, probs = pl.pallas_call(
        _attention_kernel,
        out_shape=(
            jax.ShapeDtypeStruct((B, S, H), ctx_dtype),
            jax.ShapeDtypeStruct((B, S, S), probs_dtype),
        ),
        grid_spec=grid_spec,
        compiler_params=pltpu.CompilerParams(
            dimension_semantics=("parallel",),
            vmem_limit_bytes=_VMEM_LIMIT_BYTES,
        ),
        # TODO(synk): for production S not a multiple of 128, pad S (masking padded keys
        # with -inf) so probs/ctx stores stay lane-dense; for very large S add a query-
        # tile grid axis so the [S,S] intermediates still fit v7x's 64 MiB VMEM.
    )(hs_bf, mask, relmask, w_fused, b_fused)

    # Re-insert the size-1 head dim expected by the reference output ([B, 1, S, S]).
    return ctx, probs.reshape(B, 1, S, S)


def _reference(hidden_states, attention_mask, word_word_relation, params):
    """Pure-JAX f32 reference mirroring the PyTorch forward (num_heads == 1, eval)."""
    H = hidden_states.shape[-1]
    q = hidden_states @ params["wq"].T + params["bq"]
    k = hidden_states @ params["wk"].T + params["bk"]
    v = hidden_states @ params["wv"].T + params["bv"]
    q = q[:, None]                                            # [B,1,S,H]
    k = k[:, None]
    v = v[:, None]
    scores = jnp.einsum("bhsd,bhtd->bhst", q, k)
    wdd = jnp.einsum("bhsd,dk->bhsk", q, params["distance_weight"].T)
    idx = word_word_relation[:, None].astype(jnp.int32)       # [B,1,S,S]
    gathered = jnp.take_along_axis(wdd, idx, axis=3)
    mask_out = (word_word_relation == 1)[:, None].astype(jnp.float32)
    scores = (scores + gathered * mask_out) / math.sqrt(H)
    scores = scores + attention_mask
    probs = jax.nn.softmax(scores, axis=-1)
    ctx = jnp.einsum("bhst,bhtd->bhsd", probs, v)
    ctx = jnp.transpose(ctx, (0, 2, 1, 3)).reshape(hidden_states.shape)
    return ctx, probs


if __name__ == "__main__":
    # config: hidden_size=32, num_attention_heads=1, distance_type=8, seq=8, batch=2
    B, S, H, D = 2, 8, 32, 8

    key = jax.random.PRNGKey(0)
    keys = jax.random.split(key, 10)

    params = {
        "wq": 0.02 * jax.random.normal(keys[0], (H, H), jnp.float32),
        "bq": 0.02 * jax.random.normal(keys[1], (H,), jnp.float32),
        "wk": 0.02 * jax.random.normal(keys[2], (H, H), jnp.float32),
        "bk": 0.02 * jax.random.normal(keys[3], (H,), jnp.float32),
        "wv": 0.02 * jax.random.normal(keys[4], (H, H), jnp.float32),
        "bv": 0.02 * jax.random.normal(keys[5], (H,), jnp.float32),
        # nn.Embedding(distance_type, hidden_size, padding_idx=0): zero row 0.
        "distance_weight": (0.02 * jax.random.normal(keys[6], (D, H), jnp.float32)
                            ).at[0].set(0.0),
    }

    hidden_states = jax.random.normal(keys[7], (B, S, H), jnp.float32)
    word_word_relation = jax.random.randint(keys[8], (B, S, S), 0, D, jnp.int32)
    keep = jax.random.bernoulli(keys[9], 0.8, (B, 1, 1, S)).astype(jnp.float32)
    attention_mask = (1.0 - keep) * -10000.0

    ctx, probs = bert_self_attention_distance(
        hidden_states, attention_mask, word_word_relation, params)
    ctx = jax.block_until_ready(ctx)
    probs = jax.block_until_ready(probs)

    ctx_ref, probs_ref = _reference(hidden_states, attention_mask, word_word_relation, params)

    # bf16 MXU operands + bf16 ctx/probs outputs + approx reciprocal -> loose-ish
    # tolerances against the pure-f32 reference.
    np.testing.assert_allclose(np.asarray(ctx.astype(jnp.float32)),
                               np.asarray(ctx_ref), rtol=5e-2, atol=1e-2)
    np.testing.assert_allclose(np.asarray(probs.astype(jnp.float32)),
                               np.asarray(probs_ref), rtol=5e-2, atol=1e-2)

    print("KERNEL_OK")
</pallas_src>

<mosaic_0001>
module attributes {stable_mosaic.version = 11 : i64} {
  func.func @_attention_kernel(%arg0: i32, %arg1: memref<1x8x32xbf16, #tpu.memory_space<vmem>>, %arg2: memref<1x1x8xf32, #tpu.memory_space<vmem>>, %arg3: memref<1x8x8xi8, #tpu.memory_space<vmem>>, %arg4: memref<32x97xbf16, #tpu.memory_space<vmem>>, %arg5: memref<1x97xf32, #tpu.memory_space<vmem>>, %arg6: memref<1x8x32xbf16, #tpu.memory_space<vmem>>, %arg7: memref<1x8x8xbf16, #tpu.memory_space<vmem>>) attributes {dimension_semantics = [#tpu.dimension_semantics<parallel>], iteration_bounds = array<i64: 2>, scalar_prefetch = 0 : i64, scratch_operands = 0 : i64, tpu.core_type = #tpu.core_type<tc>, window_params = [{transform_indices = @transform_0, window_bounds = array<i64: 1, 8, 32>}, {transform_indices = @transform_1, window_bounds = array<i64: 1, 1, 8>}, {transform_indices = @transform_2, window_bounds = array<i64: 1, 8, 8>}, {pipeline_mode = #tpu.pipeline_mode<synchronous>, transform_indices = @transform_3, window_bounds = array<i64: 32, 97>}, {pipeline_mode = #tpu.pipeline_mode<synchronous>, transform_indices = @transform_4, window_bounds = array<i64: 1, 97>}, {transform_indices = @transform_5, window_bounds = array<i64: 1, 8, 32>}, {transform_indices = @transform_6, window_bounds = array<i64: 1, 8, 8>}]} {
    %c0 = arith.constant 0 : index
    %c0_0 = arith.constant 0 : index
    %c0_1 = arith.constant 0 : index
    %0 = vector.load %arg1[%c0, %c0_0, %c0_1] : memref<1x8x32xbf16, #tpu.memory_space<vmem>>, vector<1x8x32xbf16>
    %1 = vector.shape_cast %0 : vector<1x8x32xbf16> to vector<8x32xbf16>
    %c0_2 = arith.constant 0 : index
    %c0_3 = arith.constant 0 : index
    %2 = vector.load %arg4[%c0_2, %c0_3] : memref<32x97xbf16, #tpu.memory_space<vmem>>, vector<32x97xbf16>
    %cst = arith.constant dense<0.000000e+00> : vector<8x97xf32>
    %3 = tpu.matmul %1, %2, %cst {dimension_numbers = #tpu.dot_dimension_numbers<[1], [0], [0], [1], [0, 0, 1, 1], [], []>} : vector<8x32xbf16>, vector<32x97xbf16>, vector<8x97xf32> -> vector<8x97xf32>
    %c0_4 = arith.constant 0 : index
    %c0_5 = arith.constant 0 : index
    %4 = vector.load %arg5[%c0_4, %c0_5] : memref<1x97xf32, #tpu.memory_space<vmem>>, vector<1x97xf32>
    %5 = vector.broadcast %4 : vector<1x97xf32> to vector<8x97xf32>
    %6 = arith.addf %3, %5 : vector<8x97xf32>
    %7 = vector.extract_strided_slice %6 {offsets = [0, 0], sizes = [8, 32], strides = [1, 1]} : vector<8x97xf32> to vector<8x32xf32>
    %8 = vector.shape_cast %7 : vector<8x32xf32> to vector<1x8x32xf32>
    %9 = arith.truncf %8 : vector<1x8x32xf32> to vector<1x8x32xbf16>
    %10 = vector.extract_strided_slice %6 {offsets = [0, 32], sizes = [8, 32], strides = [1, 1]} : vector<8x97xf32> to vector<8x32xf32>
    %11 = vector.shape_cast %10 : vector<8x32xf32> to vector<1x8x32xf32>
    %12 = arith.truncf %11 : vector<1x8x32xf32> to vector<1x8x32xbf16>
    %13 = vector.extract_strided_slice %6 {offsets = [0, 64], sizes = [8, 32], strides = [1, 1]} : vector<8x97xf32> to vector<8x32xf32>
    %14 = vector.shape_cast %13 : vector<8x32xf32> to vector<1x8x32xf32>
    %15 = arith.truncf %14 : vector<1x8x32xf32> to vector<1x8x32xbf16>
    %16 = vector.extract_strided_slice %6 {offsets = [0, 96], sizes = [8, 1], strides = [1, 1]} : vector<8x97xf32> to vector<8x1xf32>
    %17 = vector.shape_cast %16 : vector<8x1xf32> to vector<1x8x1xf32>
    "tpu.trace_start"() <{level = 10 : i32, message = "bqd,bkd->bqk"}> : () -> ()
    %cst_6 = arith.constant dense<0.000000e+00> : vector<1x8x8xf32>
    %18 = tpu.matmul %9, %12, %cst_6 {dimension_numbers = #tpu.dot_dimension_numbers<[2], [2], [1], [1], [0, 0, 0, 1, 1, 1], [0], [0]>} : vector<1x8x32xbf16>, vector<1x8x32xbf16>, vector<1x8x8xf32> -> vector<1x8x8xf32>
    "tpu.trace_stop"() : () -> ()
    %c0_7 = arith.constant 0 : index
    %c0_8 = arith.constant 0 : index
    %c0_9 = arith.constant 0 : index
    %19 = vector.load %arg3[%c0_7, %c0_8, %c0_9] : memref<1x8x8xi8, #tpu.memory_space<vmem>>, vector<1x8x8xi8>
    %20 = arith.sitofp %19 : vector<1x8x8xi8> to vector<1x8x8xf32>
    %21 = vector.broadcast %17 : vector<1x8x1xf32> to vector<1x8x8xf32>
    %22 = arith.mulf %21, %20 : vector<1x8x8xf32>
    %23 = arith.addf %18, %22 : vector<1x8x8xf32>
    %c0_10 = arith.constant 0 : index
    %c0_11 = arith.constant 0 : index
    %c0_12 = arith.constant 0 : index
    %24 = vector.load %arg2[%c0_10, %c0_11, %c0_12] : memref<1x1x8xf32, #tpu.memory_space<vmem>>, vector<1x1x8xf32>
    %25 = vector.broadcast %24 : vector<1x1x8xf32> to vector<1x8x8xf32>
    %26 = arith.addf %23, %25 : vector<1x8x8xf32>
    %cst_13 = arith.constant dense<0xFF800000> : vector<1x8xf32>
    %27 = vector.multi_reduction <maximumf>, %26, %cst_13 [2] : vector<1x8x8xf32> to vector<1x8xf32>
    %28 = vector.shape_cast %27 : vector<1x8xf32> to vector<1x8x1xf32>
    %29 = vector.broadcast %28 : vector<1x8x1xf32> to vector<1x8x8xf32>
    %30 = arith.subf %26, %29 : vector<1x8x8xf32>
    %31 = math.exp %30 : vector<1x8x8xf32>
    %cst_14 = arith.constant dense<0.000000e+00> : vector<1x8xf32>
    %32 = vector.multi_reduction <add>, %31, %cst_14 [2] : vector<1x8x8xf32> to vector<1x8xf32>
    %33 = vector.shape_cast %32 : vector<1x8xf32> to vector<1x8x1xf32>
    %34 = tpu.reciprocal %33 {approx = true} : vector<1x8x1xf32> -> vector<1x8x1xf32>
    %35 = vector.broadcast %34 : vector<1x8x1xf32> to vector<1x8x8xf32>
    %36 = arith.mulf %31, %35 : vector<1x8x8xf32>
    %37 = arith.truncf %36 : vector<1x8x8xf32> to vector<1x8x8xbf16>
    "tpu.trace_start"() <{level = 10 : i32, message = "bqk,bkd->bqd"}> : () -> ()
    %cst_15 = arith.constant dense<0.000000e+00> : vector<1x8x32xf32>
    %38 = tpu.matmul %37, %15, %cst_15 {dimension_numbers = #tpu.dot_dimension_numbers<[2], [1], [1], [2], [0, 0, 0, 1, 1, 2], [0], [0]>} : vector<1x8x8xbf16>, vector<1x8x32xbf16>, vector<1x8x32xf32> -> vector<1x8x32xf32>
    "tpu.trace_stop"() : () -> ()
    %39 = arith.truncf %38 : vector<1x8x32xf32> to vector<1x8x32xbf16>
    %c0_16 = arith.constant 0 : index
    %c0_17 = arith.constant 0 : index
    %c0_18 = arith.constant 0 : index
    %40 = vector.load %arg6[%c0_16, %c0_17, %c0_18] : memref<1x8x32xbf16, #tpu.memory_space<vmem>>, vector<1x8x32xbf16>
    tpu.vector_store %arg6[%c0_16, %c0_17, %c0_18], %39 {strides = array<i32>} : memref<1x8x32xbf16, #tpu.memory_space<vmem>>, vector<1x8x32xbf16>,
    %41 = arith.truncf %36 : vector<1x8x8xf32> to vector<1x8x8xbf16>
    %c0_19 = arith.constant 0 : index
    %c0_20 = arith.constant 0 : index
    %c0_21 = arith.constant 0 : index
    %42 = vector.load %arg7[%c0_19, %c0_20, %c0_21] : memref<1x8x8xbf16, #tpu.memory_space<vmem>>, vector<1x8x8xbf16>
    tpu.vector_store %arg7[%c0_19, %c0_20, %c0_21], %41 {strides = array<i32>} : memref<1x8x8xbf16, #tpu.memory_space<vmem>>, vector<1x8x8xbf16>,
    return
  }
  func.func @transform_0(%arg0: i32) -> (i32, i32, i32) {
    %c0_i32 = arith.constant 0 : i32
    %c0_i32_0 = arith.constant 0 : i32
    %c0_i32_1 = arith.constant 0 : i32
    return %arg0, %c0_i32, %c0_i32_0 : i32, i32, i32
  }
  func.func @transform_1(%arg0: i32) -> (i32, i32, i32) {
    %c0_i32 = arith.constant 0 : i32
    %c0_i32_0 = arith.constant 0 : i32
    %c0_i32_1 = arith.constant 0 : i32
    return %arg0, %c0_i32, %c0_i32_0 : i32, i32, i32
  }
  func.func @transform_2(%arg0: i32) -> (i32, i32, i32) {
    %c0_i32 = arith.constant 0 : i32
    %c0_i32_0 = arith.constant 0 : i32
    %c0_i32_1 = arith.constant 0 : i32
    return %arg0, %c0_i32, %c0_i32_0 : i32, i32, i32
  }
  func.func @transform_3(%arg0: i32) -> (i32, i32) {
    %c0_i32 = arith.constant 0 : i32
    %c0_i32_0 = arith.constant 0 : i32
    %c0_i32_1 = arith.constant 0 : i32
    return %c0_i32, %c0_i32_0 : i32, i32
  }
  func.func @transform_4(%arg0: i32) -> (i32, i32) {
    %c0_i32 = arith.constant 0 : i32
    %c0_i32_0 = arith.constant 0 : i32
    %c0_i32_1 = arith.constant 0 : i32
    return %c0_i32, %c0_i32_0 : i32, i32
  }
  func.func @transform_5(%arg0: i32) -> (i32, i32, i32) {
    %c0_i32 = arith.constant 0 : i32
    %c0_i32_0 = arith.constant 0 : i32
    %c0_i32_1 = arith.constant 0 : i32
    return %arg0, %c0_i32, %c0_i32_0 : i32, i32, i32
  }
  func.func @transform_6(%arg0: i32) -> (i32, i32, i32) {
    %c0_i32 = arith.constant 0 : i32
    %c0_i32_0 = arith.constant 0 : i32
    %c0_i32_1 = arith.constant 0 : i32
    return %arg0, %c0_i32, %c0_i32_0 : i32, i32, i32
  }
}

</mosaic_0001>

<llo_original>
// kernel: tpu_custom_call.1
$region0: #{tpu_custom_call.1}
  #allocation0 [shape = 'u32[]', space=smem, size = 0x4, offset = 0x4, fixed_abs, tag = 'smem constant byte address 0x4 - core index']
  #allocation1 [shape = 'u32[144,128]{1,0:T(1,128)}', space=vmem, size = 0x12000, scoped, tag = 'internal scratch']
  %s0 = inlined_call_operand.hbm [shape: bf16[2,8,32], index: 0, kind: input, shape index: {}]
  %s1 = inlined_call_operand.hbm [shape: f32[2,1,8], index: 1, kind: input, shape index: {}]
  %s2 = inlined_call_operand.hbm [shape: s8[2,8,8], index: 2, kind: input, shape index: {}]
  %s3 = inlined_call_operand.hbm [shape: bf16[32,97], index: 3, kind: input, shape index: {}]
  %s4 = inlined_call_operand.vmem [shape: f32[1,97], index: 4, kind: input, shape index: {}]
  %s5 = inlined_call_operand.hbm [shape: bf16[2,8,32], index: 5, kind: output, shape index: {0}]
  %s6 = inlined_call_operand.hbm [shape: bf16[2,8,8], index: 6, kind: output, shape index: {1}]
  %7 = xla_tuple %s5, %s6
  %s8 = sld [smem:[#allocation0]]
  $region77: #{tpu_custom_call.1} parent=0
    _
  %s10 = ssub.s32 1, %s8
  %s11 = scalar_select 0, %s10, %s8
  $region1: #{tpu_custom_call.1} parent=0
    #allocation2 [shape = 'u8[4096]{0}', space=vmem, size = 0x1000, scoped, tag = 'input window, operand 0']
    #allocation3 [shape = 's32[2]{0}', space=sflag, size = 0x8, scoped, tag = 'scoped memory for tpu_custom_call.1']
    #allocation4 [shape = 's32[2]{0}', space=sflag, size = 0x8, scoped, tag = 'scoped memory for tpu_custom_call.1']
    #allocation5 [shape = 'u8[1024]{0}', space=vmem, size = 0x400, scoped, tag = 'input window, operand 1']
    #allocation6 [shape = 's32[2]{0}', space=sflag, size = 0x8, scoped, tag = 'scoped memory for tpu_custom_call.1']
    #allocation7 [shape = 'u8[2048]{0}', space=vmem, size = 0x800, scoped, tag = 'input window, operand 2']
    #allocation8 [shape = 'u8[8192]{0}', space=vmem, size = 0x2000, scoped, tag = 'input window, operand 3, single buffered']
    #allocation9 [shape = 's32[1]{0}', space=sflag, size = 0x4, scoped, tag = 'scoped memory for tpu_custom_call.1']
    #allocation10 [shape = 'u8[4096]{0}', space=vmem, size = 0x1000, scoped, tag = 'output window, operand 0']
    #allocation11 [shape = 'u8[4096]{0}', space=vmem, size = 0x1000, scoped, tag = 'output window, operand 1']
    #allocation12 [shape = 's32[2]{0}', space=sflag, size = 0x8, scoped, tag = 'scoped memory for tpu_custom_call.1']
    %12 = vsyncpa [#allocation3], 0
    %s13 = scalar_lea.sflag [#allocation3], 1
    %14 = vsyncpa %s13, 0
    %15 = vsyncpa [#allocation6], 0
    %s16 = scalar_lea.sflag [#allocation6], 1
    %17 = vsyncpa %s16, 0
    %18 = vsyncpa [#allocation9], 0
    %19 = vsyncpa [#allocation4], 0
    %s20 = scalar_lea.sflag [#allocation4], 1
    %21 = vsyncpa %s20, 0
    %22 = vsyncpa [#allocation12], 0
    %s23 = scalar_lea.sflag [#allocation12], 1
    %24 = vsyncpa %s23, 0
    loop: start=0, step=1, limit=4
    $region2: #{tpu_custom_call.1} parent=1 // loop_pre_header
      _
    $region3: #{tpu_custom_call.1} parent=1 // loop_header
      %s26 = sphi 0, %s30
      %p27 = scmp.ge.s32.totalorder %s26, 4
      %s36 = sphi 0, %s38
      %s39 = sphi 0, %s36
      %s40 = sphi 0, %s39
      %s56 = sphi 0, %s40
      %s62 = sphi 0, %s64
      %s65 = sphi 0, %s62
      %s66 = sphi 0, %s65
      %s82 = sphi 0, %s66
      %s88 = sphi 0, %s90
      %s91 = sphi 0, %s88
      %s92 = sphi 0, %s91
      %s108 = sphi 0, %s92
      %s112 = sphi 0, %s112
      %s114 = sphi 0, %s112
      %s115 = sphi 0, %s114
      %s129 = sphi 0, %s115
      %s133 = sphi 0, %s133
      %s135 = sphi 0, %s133
      %s136 = sphi 0, %s135
      %s150 = sphi 0, %s136
      %s156 = sphi 0, %s158
      %s159 = sphi 0, %s156
      %s160 = sphi 0, %s159
      %s176 = sphi 0, %s160
      %s182 = sphi 0, %s184
      %s185 = sphi 0, %s182
      %s186 = sphi 0, %s185
      %s202 = sphi 0, %s186
    $region4: #{tpu_custom_call.1} parent=1 // loop_header_branch
      %29 = sbr.rel (%p27) target = $region8
    $region5: #{tpu_custom_call.1} parent=1 // loop_body
      %s31 = ssub.s32 %s26, 1
      %s32 = ssub.s32 %s26, 2
      %s33 = sadd.s32 %s26, 1
      %s34 = ssub.s32 %s26, %s33
      %p35 = scmp.eq.s32.totalorder %s34, 0
      %s37 = sadd.s32 %s36, 1
      %s38 = scalar_select %p35, %s36, %s37
      %p41 = pneg %p35
      %p42 = scmp.eq.s32.totalorder %s26, 1
      %p43 = por %p41, %p42
      %p44 = scmp.ne.s32.totalorder %s36, %s39
      %p45 = scmp.eq.s32.totalorder %s26, 0
      %p46 = por %p44, %p45
      %p47 = scmp.ne.s32.totalorder %s36, %s39
      %p48 = scmp.eq.s32.totalorder %s31, 1
      %p49 = por %p47, %p48
      %p50 = scmp.ne.s32.totalorder %s39, %s40
      %p51 = scmp.eq.s32.totalorder %s31, 0
      %p52 = por %p50, %p51
      %p53 = scmp.ne.s32.totalorder %s39, %s40
      %p54 = scmp.eq.s32.totalorder %s32, 1
      %p55 = por %p53, %p54
      %p57 = scmp.ne.s32.totalorder %s40, %s56
      %p58 = scmp.eq.s32.totalorder %s32, 0
      %p59 = por %p57, %p58
      %s60 = ssub.s32 %s26, %s33
      %p61 = scmp.eq.s32.totalorder %s60, 0
      %s63 = sadd.s32 %s62, 1
      %s64 = scalar_select %p61, %s62, %s63
      %p67 = pneg %p61
      %p68 = scmp.eq.s32.totalorder %s26, 1
      %p69 = por %p67, %p68
      %p70 = scmp.ne.s32.totalorder %s62, %s65
      %p71 = scmp.eq.s32.totalorder %s26, 0
      %p72 = por %p70, %p71
      %p73 = scmp.ne.s32.totalorder %s62, %s65
      %p74 = scmp.eq.s32.totalorder %s31, 1
      %p75 = por %p73, %p74
      %p76 = scmp.ne.s32.totalorder %s65, %s66
      %p77 = scmp.eq.s32.totalorder %s31, 0
      %p78 = por %p76, %p77
      %p79 = scmp.ne.s32.totalorder %s65, %s66
      %p80 = scmp.eq.s32.totalorder %s32, 1
      %p81 = por %p79, %p80
      %p83 = scmp.ne.s32.totalorder %s66, %s82
      %p84 = scmp.eq.s32.totalorder %s32, 0
      %p85 = por %p83, %p84
      %s86 = ssub.s32 %s26, %s33
      %p87 = scmp.eq.s32.totalorder %s86, 0
      %s89 = sadd.s32 %s88, 1
      %s90 = scalar_select %p87, %s88, %s89
      %p93 = pneg %p87
      %p94 = scmp.eq.s32.totalorder %s26, 1
      %p95 = por %p93, %p94
      %p96 = scmp.ne.s32.totalorder %s88, %s91
      %p97 = scmp.eq.s32.totalorder %s26, 0
      %p98 = por %p96, %p97
      %p99 = scmp.ne.s32.totalorder %s88, %s91
      %p100 = scmp.eq.s32.totalorder %s31, 1
      %p101 = por %p99, %p100
      %p102 = scmp.ne.s32.totalorder %s91, %s92
      %p103 = scmp.eq.s32.totalorder %s31, 0
      %p104 = por %p102, %p103
      %p105 = scmp.ne.s32.totalorder %s91, %s92
      %p106 = scmp.eq.s32.totalorder %s32, 1
      %p107 = por %p105, %p106
      %p109 = scmp.ne.s32.totalorder %s92, %s108
      %p110 = scmp.eq.s32.totalorder %s32, 0
      %p111 = por %p109, %p110
      %s113 = sadd.s32 %s112, 1
      %p116 = scmp.eq.s32.totalorder %s26, 1
      %p117 = scmp.ne.s32.totalorder %s112, %s114
      %p118 = scmp.eq.s32.totalorder %s26, 0
      %p119 = por %p117, %p118
      %p120 = scmp.ne.s32.totalorder %s112, %s114
      %p121 = scmp.eq.s32.totalorder %s31, 1
      %p122 = por %p120, %p121
      %p123 = scmp.ne.s32.totalorder %s114, %s115
      %p124 = scmp.eq.s32.totalorder %s31, 0
      %p125 = por %p123, %p124
      %p126 = scmp.ne.s32.totalorder %s114, %s115
      %p127 = scmp.eq.s32.totalorder %s32, 1
      %p128 = por %p126, %p127
      %p130 = scmp.ne.s32.totalorder %s115, %s129
      %p131 = scmp.eq.s32.totalorder %s32, 0
      %p132 = por %p130, %p131
      %s134 = sadd.s32 %s133, 1
      %p137 = scmp.eq.s32.totalorder %s26, 1
      %p138 = scmp.ne.s32.totalorder %s133, %s135
      %p139 = scmp.eq.s32.totalorder %s26, 0
      %p140 = por %p138, %p139
      %p141 = scmp.ne.s32.totalorder %s133, %s135
      %p142 = scmp.eq.s32.totalorder %s31, 1
      %p143 = por %p141, %p142
      %p144 = scmp.ne.s32.totalorder %s135, %s136
      %p145 = scmp.eq.s32.totalorder %s31, 0
      %p146 = por %p144, %p145
      %p147 = scmp.ne.s32.totalorder %s135, %s136
      %p148 = scmp.eq.s32.totalorder %s32, 1
      %p149 = por %p147, %p148
      %p151 = scmp.ne.s32.totalorder %s136, %s150
      %p152 = scmp.eq.s32.totalorder %s32, 0
      %p153 = por %p151, %p152
      %s154 = ssub.s32 %s26, %s33
      %p155 = scmp.eq.s32.totalorder %s154, 0
      %s157 = sadd.s32 %s156, 1
      %s158 = scalar_select %p155, %s156, %s157
      %p161 = pneg %p155
      %p162 = scmp.eq.s32.totalorder %s26, 1
      %p163 = por %p161, %p162
      %p164 = scmp.ne.s32.totalorder %s156, %s159
      %p165 = scmp.eq.s32.totalorder %s26, 0
      %p166 = por %p164, %p165
      %p167 = scmp.ne.s32.totalorder %s156, %s159
      %p168 = scmp.eq.s32.totalorder %s31, 1
      %p169 = por %p167, %p168
      %p170 = scmp.ne.s32.totalorder %s159, %s160
      %p171 = scmp.eq.s32.totalorder %s31, 0
      %p172 = por %p170, %p171
      %p173 = scmp.ne.s32.totalorder %s159, %s160
      %p174 = scmp.eq.s32.totalorder %s32, 1
      %p175 = por %p173, %p174
      %p177 = scmp.ne.s32.totalorder %s160, %s176
      %p178 = scmp.eq.s32.totalorder %s32, 0
      %p179 = por %p177, %p178
      %s180 = ssub.s32 %s26, %s33
      %p181 = scmp.eq.s32.totalorder %s180, 0
      %s183 = sadd.s32 %s182, 1
      %s184 = scalar_select %p181, %s182, %s183
      %p187 = pneg %p181
      %p188 = scmp.eq.s32.totalorder %s26, 1
      %p189 = por %p187, %p188
      %p190 = scmp.ne.s32.totalorder %s182, %s185
      %p191 = scmp.eq.s32.totalorder %s26, 0
      %p192 = por %p190, %p191
      %p193 = scmp.ne.s32.totalorder %s182, %s185
      %p194 = scmp.eq.s32.totalorder %s31, 1
      %p195 = por %p193, %p194
      %p196 = scmp.ne.s32.totalorder %s185, %s186
      %p197 = scmp.eq.s32.totalorder %s31, 0
      %p198 = por %p196, %p197
      %p199 = scmp.ne.s32.totalorder %s185, %s186
      %p200 = scmp.eq.s32.totalorder %s32, 1
      %p201 = por %p199, %p200
      %p203 = scmp.ne.s32.totalorder %s186, %s202
      %p204 = scmp.eq.s32.totalorder %s32, 0
      %p205 = por %p203, %p204
      %p206 = scmp.le.s32.totalorder 1, %s26
      %p207 = scmp.lt.s32.totalorder %s26, 3
      %p208 = pnand %p206, %p207
      %p209 = pneg %p208
      // Predicated region
      $region9: #{tpu_custom_call.1} parent=5 // pred_check
        _
      $region10: #{tpu_custom_call.1} parent=5 // pred_check_branch
        %211 = sbr.rel (%p208) target = $region12
      $region11: #{tpu_custom_call.1} parent=5 // pred_region
        %s212 = ssub.s32 %s26, 1
        // Predicated region
        $region13: #{tpu_custom_call.1} parent=11 // pred_check
          %p213 = pneg %p125
        $region14: #{tpu_custom_call.1} parent=11 // pred_check_branch
          %215 = sbr.rel (%p213) target = $region16
        $region15: #{tpu_custom_call.1} parent=11 // pred_region
          %s217 = ssub.s32 256, 256
          %218 = vsyncadd [#allocation9], %s217
          %s219 = sshll.u32 [#allocation8], 4
          %s220 = int_to_ptr.vmem [resolvable:$true] %s219
          %225 = dma.hbm_to_vmem [thread:$0]  %s3, 256, %s220, [#allocation9], 64, 64, 4
        $region16: #{tpu_custom_call.1} parent=11 // pred_fallthru
          _
        // Predicated region
        $region17: #{tpu_custom_call.1} parent=11 // pred_check
          %p226 = pneg %p146
        $region18: #{tpu_custom_call.1} parent=11 // pred_check_branch
          %228 = sbr.rel (%p226) target = $region20
        $region19: #{tpu_custom_call.1} parent=11 // pred_region
          _
        $region20: #{tpu_custom_call.1} parent=11 // pred_fallthru
          _
      $region12: #{tpu_custom_call.1} parent=5 // pred_fallthru
        _
      %p229 = scmp.lt.s32.totalorder %s26, 2
      // Predicated region
      $region21: #{tpu_custom_call.1} parent=5 // pred_check
        %p230 = pneg %p229
      $region22: #{tpu_custom_call.1} parent=5 // pred_check_branch
        %232 = sbr.rel (%p230) target = $region24
      $region23: #{tpu_custom_call.1} parent=5 // pred_region
        // Predicated region
        $region25: #{tpu_custom_call.1} parent=23 // pred_check
          %p233 = pneg %p46
        $region26: #{tpu_custom_call.1} parent=23 // pred_check_branch
          %235 = sbr.rel (%p233) target = $region28
        $region27: #{tpu_custom_call.1} parent=23 // pred_region
          %s236 = sand.u32 %s36, 1
          %s237 = scalar_lea.sflag [#allocation3], %s236
          %s238 = sand.u32 %s36, 1
          %s239 = smul.addr %s238, 4
          %s240 = scalar_lea.vmem [#allocation2], %s239
          %s242 = ssub.s32 64, 64
          %243 = vsyncadd %s237, %s242
          %s244 = smul.addr %s26, 64
          %s245 = scalar_lea.hbm %s0, %s244
          %s247 = sshll.u32 %s240, 4
          %s248 = int_to_ptr.vmem [resolvable:$true] %s247
          %250 = dma.hbm_to_vmem [thread:$0]  %s245, 64, %s248, %s237
        $region28: #{tpu_custom_call.1} parent=23 // pred_fallthru
          _
        // Predicated region
        $region29: #{tpu_custom_call.1} parent=23 // pred_check
          %p251 = pneg %p72
        $region30: #{tpu_custom_call.1} parent=23 // pred_check_branch
          %253 = sbr.rel (%p251) target = $region32
        $region31: #{tpu_custom_call.1} parent=23 // pred_region
          %s254 = sand.u32 %s26, 1
          %s255 = scalar_lea.sflag [#allocation6], %s254
          %s256 = sand.u32 %s62, 1
          %s257 = scalar_lea.vmem [#allocation5], %s256
          %s259 = ssub.s32 16, 16
          %260 = vsyncadd %s255, %s259
          %s261 = smul.addr %s26, 16
          %s262 = scalar_lea.hbm %s1, %s261
          %s264 = sshll.u32 %s257, 4
          %s265 = int_to_ptr.vmem [resolvable:$true] %s264
          %267 = dma.hbm_to_vmem [thread:$0]  %s262, 16, %s265, %s255
        $region32: #{tpu_custom_call.1} parent=23 // pred_fallthru
          _
        // Predicated region
        $region33: #{tpu_custom_call.1} parent=23 // pred_check
          %p268 = pneg %p98
        $region34: #{tpu_custom_call.1} parent=23 // pred_check_branch
          %270 = sbr.rel (%p268) target = $region36
        $region35: #{tpu_custom_call.1} parent=23 // pred_region
          %s271 = sand.u32 %s26, 1
          %s272 = scalar_lea.sflag [#allocation6], %s271
          %s273 = sand.u32 %s88, 1
          %s274 = smul.addr %s273, 2
          %s275 = scalar_lea.vmem [#allocation7], %s274
          %s277 = ssub.s32 32, 32
          %278 = vsyncadd %s272, %s277
          %s279 = smul.addr %s26, 32
          %s280 = scalar_lea.hbm %s2, %s279
          %s282 = sshll.u32 %s275, 4
          %s283 = int_to_ptr.vmem [resolvable:$true] %s282
          %285 = dma.hbm_to_vmem [thread:$0]  %s280, 32, %s283, %s272
        $region36: #{tpu_custom_call.1} parent=23 // pred_fallthru
          _
      $region24: #{tpu_custom_call.1} parent=5 // pred_fallthru
        _
      %p286 = scmp.le.s32.totalorder 1, %s26
      %p287 = scmp.lt.s32.totalorder %s26, 3
      %p288 = pnand %p286, %p287
      %p289 = pneg %p288
      // Predicated region
      $region37: #{tpu_custom_call.1} parent=5 // pred_check
        _
      $region38: #{tpu_custom_call.1} parent=5 // pred_check_branch
        %291 = sbr.rel (%p288) target = $region40
      $region39: #{tpu_custom_call.1} parent=5 // pred_region
        %s292 = ssub.s32 %s26, 1
        %s293 = sand.u32 %s39, 1
        %s294 = scalar_lea.sflag [#allocation3], %s293
        %s295 = sand.u32 %s39, 1
        %s296 = smul.addr %s295, 4
        %s297 = scalar_lea.vmem [#allocation2], %s296
        // Predicated region
        $region41: #{tpu_custom_call.1} parent=39 // pred_check
          %p298 = pneg %p52
        $region42: #{tpu_custom_call.1} parent=39 // pred_check_branch
          %300 = sbr.rel (%p298) target = $region44
        $region43: #{tpu_custom_call.1} parent=39 // pred_region
          %301 = dma.done %s294, 64
        $region44: #{tpu_custom_call.1} parent=39 // pred_fallthru
          _
        %s302 = sand.u32 %s31, 1
        %s303 = scalar_lea.sflag [#allocation6], %s302
        %s304 = sand.u32 %s65, 1
        %s305 = scalar_lea.vmem [#allocation5], %s304
        // Predicated region
        $region45: #{tpu_custom_call.1} parent=39 // pred_check
          %p306 = pneg %p78
        $region46: #{tpu_custom_call.1} parent=39 // pred_check_branch
          %308 = sbr.rel (%p306) target = $region48
        $region47: #{tpu_custom_call.1} parent=39 // pred_region
          %309 = dma.done %s303, 16
        $region48: #{tpu_custom_call.1} parent=39 // pred_fallthru
          _
        %s310 = sand.u32 %s31, 1
        %s311 = scalar_lea.sflag [#allocation6], %s310
        %s312 = sand.u32 %s91, 1
        %s313 = smul.addr %s312, 2
        %s314 = scalar_lea.vmem [#allocation7], %s313
        // Predicated region
        $region49: #{tpu_custom_call.1} parent=39 // pred_check
          %p315 = pneg %p104
        $region50: #{tpu_custom_call.1} parent=39 // pred_check_branch
          %317 = sbr.rel (%p315) target = $region52
        $region51: #{tpu_custom_call.1} parent=39 // pred_region
          %318 = dma.done %s311, 32
        $region52: #{tpu_custom_call.1} parent=39 // pred_fallthru
          _
        // Predicated region
        $region53: #{tpu_custom_call.1} parent=39 // pred_check
          %p319 = pneg %p125
        $region54: #{tpu_custom_call.1} parent=39 // pred_check_branch
          %321 = sbr.rel (%p319) target = $region56
        $region55: #{tpu_custom_call.1} parent=39 // pred_region
          %322 = dma.done [#allocation9], 256
        $region56: #{tpu_custom_call.1} parent=39 // pred_fallthru
          _
        %s323 = sand.u32 %s39, 1
        %s324 = scalar_lea.sflag [#allocation3], %s323
        %s325 = sand.u32 %s39, 1
        %s326 = smul.addr %s325, 4
        %s327 = scalar_lea.vmem [#allocation2], %s326
        %p328 = pneg %p52
        %p329 = pneg %p49
        %s330 = sand.u32 %s31, 1
        %s331 = scalar_lea.sflag [#allocation6], %s330
        %s332 = sand.u32 %s65, 1
        %s333 = scalar_lea.vmem [#allocation5], %s332
        %p334 = pneg %p78
        %p335 = pneg %p75
        %s336 = sand.u32 %s31, 1
        %s337 = scalar_lea.sflag [#allocation6], %s336
        %s338 = sand.u32 %s91, 1
        %s339 = smul.addr %s338, 2
        %s340 = scalar_lea.vmem [#allocation7], %s339
        %p341 = pneg %p104
        %p342 = pneg %p101
        %p343 = pneg %p125
        %p344 = pneg %p122
        %p345 = pneg %p146
        %p346 = pneg %p143
        %p347 = pneg %p172
        %p348 = pneg %p169
        %s349 = sand.u32 %s159, 1
        %s350 = scalar_lea.sflag [#allocation4], %s349
        %s351 = sand.u32 %s159, 1
        %s352 = smul.addr %s351, 4
        %s353 = scalar_lea.vmem [#allocation10], %s352
        %p354 = pneg %p198
        %p355 = pneg %p195
        %s356 = sand.u32 %s185, 1
        %s357 = scalar_lea.sflag [#allocation12], %s356
        %s358 = sand.u32 %s185, 1
        %s359 = smul.addr %s358, 4
        %s360 = scalar_lea.vmem [#allocation11], %s359
        %v362 = vld [vmem:[%s297] sm:$0xf]
        %v363 = vld [vmem:[#allocation8] sm:$0xf]
        %v364 = vld [vmem:[#allocation8 + $0x4] sm:$0xf]
        %v365 = vld [vmem:[#allocation8 + $0x8] sm:$0xf]
        %v366 = vld [vmem:[#allocation8 + $0xc] sm:$0xf]
        %v367 = vld [vmem:[%s4] sm:$0x1]
        %v369 = vlaneseq
        %v370 = vshrl.u32 %v369, 7
        %v371 = vsub.s32 0, %v370
        %v372 = vrot.slane %v367, %v371
        %v378 = vunpack.c.l.b16 %v363
        %v379 = vunpack.c.l.b16 %v364
        %v380 = vunpack.c.l.b16 %v365
        %v381 = vunpack.c.l.b16 %v366
        %v382 = vpack.c.b16 %v379, %v378
        %v383 = vpack.c.b16 %v381, %v380
        %vm386 = vcmask 261120
        %v388 = vsel %vm386, %v362, 0
        %390 = vmatprep.subr.bf16.mxu0 0
        %391 = vmatpush1.bf16.msra.mxu0 0
        %392 = vmatprep.subr.bf16.mxu0 0
        %393 = vmatpush1.bf16.msra.mxu0 0
        %394 = vmatprep.subr.bf16.mxu0 0
        %395 = vmatpush1.bf16.msra.mxu0 0
        %396 = vmatprep.subr.bf16.mxu0 0
        %397 = vmatpush1.bf16.msra.mxu0 0
        %398 = vmatprep.subr.bf16.mxu0 0
        %399 = vmatpush1.bf16.msra.mxu0 0
        %400 = vmatprep.subr.bf16.mxu0 0
        %401 = vmatpush1.bf16.msra.mxu0 0
        %402 = vmatprep.subr.bf16.mxu0 0
        %403 = vmatpush1.bf16.msra.mxu0 %v383
        %404 = vmatprep.subr.bf16.mxu0 0
        %405 = vmatpush1.bf16.msra.mxu0 %v382
        %406 = vmatprep.subr.bf16.mxu0 0
        %407 = vmatpush2.bf16.msra.mxu0 0
        %408 = vmatprep.subr.bf16.mxu0 0
        %409 = vmatpush2.bf16.msra.mxu0 0
        %410 = vmatprep.subr.bf16.mxu0 0
        %411 = vmatpush2.bf16.msra.mxu0 0
        %412 = vmatprep.subr.bf16.mxu0 0
        %413 = vmatpush2.bf16.msra.mxu0 0
        %414 = vmatprep.subr.bf16.mxu0 0
        %415 = vmatpush2.bf16.msra.mxu0 0
        %416 = vmatprep.subr.bf16.mxu0 0
        %417 = vmatpush2.bf16.msra.mxu0 0
        %418 = vmatprep.subr.bf16.mxu0 0
        %419 = vmatpush2.bf16.msra.mxu0 0
        %420 = vmatprep.subr.bf16.mxu0 0
        %421 = vmatpush2.bf16.msra.mxu0 0
        %422 = vmatprep.mubr.bf16.mxu0 0
        %423 = vmatmul.mubr.bf16.gmra.mxu0 %v388
        %v424 = vpop.f32.mrf.mxu0
        %v425 = vadd.f32 %v372, %v424
        %v426 = vpop.f32.mrf.mxu0
        %v427 = vpop.f32.mrf.mxu0
        %v428 = vpop.f32.mrf.mxu0
        %429 = vdwg.mxu0
        %v430 = vpack.c.bf16 %v425, %v425
        %v431 = vld [vmem:[%s314] sm:$0x3]
        %v432 = vunpack.c.0.s8 %v431
        %v433 = vcvt.s32.f32 %v432
        %435 = vset.pattern.permute.xlu0 96
        %436 = vperm.xlu0 %435, %v425
        %v437 = vpop.permute.xlu0 %436
        %v439 = vmul.f32 %v437, %v433
        %441 = vrot.lane.b32.xlu0 %v430, 96
        %v442 = vpop.permute.xlu0 %441
        %v444 = vsel %vm386, %v430, 0
        %v447 = vsel %vm386, %v442, 0
        %449 = vmatprep.subr.bf16.mxu0 0
        %450 = vmatpush1.bf16.xpose.msra.mxu0 0
        %451 = vmatprep.subr.bf16.mxu0 0
        %452 = vmatpush1.bf16.xpose.msra.mxu0 0
        %453 = vmatprep.subr.bf16.mxu0 0
        %454 = vmatpush1.bf16.xpose.msra.mxu0 0
        %455 = vmatprep.subr.bf16.mxu0 0
        %456 = vmatpush1.bf16.xpose.msra.mxu0 0
        %457 = vmatprep.subr.bf16.mxu0 0
        %458 = vmatpush1.bf16.xpose.msra.mxu0 0
        %459 = vmatprep.subr.bf16.mxu0 0
        %460 = vmatpush1.bf16.xpose.msra.mxu0 0
        %461 = vmatprep.subr.bf16.mxu0 0
        %462 = vmatpush1.bf16.xpose.msra.mxu0 0
        %463 = vmatprep.subr.bf16.mxu0 0
        %464 = vmatpush1.bf16.xpose.msra.mxu0 %v447
        %465 = vmatprep.subr.bf16.mxu0 0
        %466 = vmatpush2.bf16.xpose.msra.mxu0 0
        %467 = vmatprep.subr.bf16.mxu0 0
        %468 = vmatpush2.bf16.xpose.msra.mxu0 0
        %469 = vmatprep.subr.bf16.mxu0 0
        %470 = vmatpush2.bf16.xpose.msra.mxu0 0
        %471 = vmatprep.subr.bf16.mxu0 0
        %472 = vmatpush2.bf16.xpose.msra.mxu0 0
        %473 = vmatprep.subr.bf16.mxu0 0
        %474 = vmatpush2.bf16.xpose.msra.mxu0 0
        %475 = vmatprep.subr.bf16.mxu0 0
        %476 = vmatpush2.bf16.xpose.msra.mxu0 0
        %477 = vmatprep.subr.bf16.mxu0 0
        %478 = vmatpush2.bf16.xpose.msra.mxu0 0
        %479 = vmatprep.subr.bf16.mxu0 0
        %480 = vmatpush2.bf16.xpose.msra.mxu0 0
        %481 = vmatprep.mubr.bf16.mxu0 0
        %482 = vmatmul.mubr.bf16.gmra.mxu0 %v444
        %v483 = vpop.f32.mrf.mxu0
        %v484 = vadd.f32 %v439, %v483
        %v485 = vpop.f32.mrf.mxu0
        %v486 = vpop.f32.mrf.mxu0
        %v487 = vpop.f32.mrf.mxu0
        %488 = vdwg.mxu0
        %v489 = vld [vmem:[%s305] sm:$0x1]
        %v491 = vlaneseq
        %v492 = vshrl.u32 %v491, 7
        %v493 = vsub.s32 0, %v492
        %v494 = vrot.slane %v489, %v493
        %v496 = vadd.f32 %v484, %v494
        %vm497 = vcmask 64512
        %v498 = vsel %vm497, %v496, -inf
        %499 = vmax.xlane.f32.xlu0 %v498
        %v500 = vpop.xlane.xlu0 %499
        %v501 = vsub.f32 %v496, %v500
        %v502 = vmul.f32 %v501, 1.442695
        %v503 = vpow.pop %v502
        %v504 = vsel %vm497, %v503, 0.0
        %505 = vadd.xlane.f32.xlu0 %v504
        %v506 = vpop.xlane.xlu0 %505
        %v507 = vrcp.pop %v506
        %v508 = vmul.f32 %v503, %v507
        %v509 = vpack.c.bf16 %v508, %v508
        %510 = vrot.lane.b32.xlu0 %v430, 64
        %v511 = vpop.permute.xlu0 %510
        %v513 = vsel %vm497, %v509, 0
        %vm515 = vcmask 1043456
        %v517 = vsel %vm515, %v511, 0
        %519 = vmatprep.subr.bf16.mxu0 0
        %520 = vmatpush1.bf16.msra.mxu0 0
        %521 = vmatprep.subr.bf16.mxu0 0
        %522 = vmatpush1.bf16.msra.mxu0 0
        %523 = vmatprep.subr.bf16.mxu0 0
        %524 = vmatpush1.bf16.msra.mxu0 0
        %525 = vmatprep.subr.bf16.mxu0 0
        %526 = vmatpush1.bf16.msra.mxu0 0
        %527 = vmatprep.subr.bf16.mxu0 0
        %528 = vmatpush1.bf16.msra.mxu0 0
        %529 = vmatprep.subr.bf16.mxu0 0
        %530 = vmatpush1.bf16.msra.mxu0 0
        %531 = vmatprep.subr.bf16.mxu0 0
        %532 = vmatpush1.bf16.msra.mxu0 0
        %533 = vmatprep.subr.bf16.mxu0 0
        %534 = vmatpush1.bf16.msra.mxu0 %v517
        %535 = vmatprep.subr.bf16.mxu0 0
        %536 = vmatpush2.bf16.msra.mxu0 0
        %537 = vmatprep.subr.bf16.mxu0 0
        %538 = vmatpush2.bf16.msra.mxu0 0
        %539 = vmatprep.subr.bf16.mxu0 0
        %540 = vmatpush2.bf16.msra.mxu0 0
        %541 = vmatprep.subr.bf16.mxu0 0
        %542 = vmatpush2.bf16.msra.mxu0 0
        %543 = vmatprep.subr.bf16.mxu0 0
        %544 = vmatpush2.bf16.msra.mxu0 0
        %545 = vmatprep.subr.bf16.mxu0 0
        %546 = vmatpush2.bf16.msra.mxu0 0
        %547 = vmatprep.subr.bf16.mxu0 0
        %548 = vmatpush2.bf16.msra.mxu0 0
        %549 = vmatprep.subr.bf16.mxu0 0
        %550 = vmatpush2.bf16.msra.mxu0 0
        %551 = vmatprep.mubr.bf16.mxu0 0
        %552 = vmatmul.mubr.bf16.gmra.mxu0 %v513
        %v553 = vpop.f32.mrf.mxu0
        %v554 = vadd.f32 0.0, %v553
        %v555 = vpop.f32.mrf.mxu0
        %v556 = vpop.f32.mrf.mxu0
        %v557 = vpop.f32.mrf.mxu0
        %558 = vdwg.mxu0
        %v559 = vpack.c.bf16 %v554, %v554
        %vm560 = vcmask 257024
        %561 = vst.msk [vmem:[%s353] sm:$0xf] %vm560, %v559
        %vm562 = vcmask 60416
        %563 = vst.msk [vmem:[%s360] sm:$0xf] %vm562, %v509
        %s564 = sand.u32 %s159, 1
        %s565 = scalar_lea.sflag [#allocation4], %s564
        %s566 = sand.u32 %s159, 1
        %s567 = smul.addr %s566, 4
        %s568 = scalar_lea.vmem [#allocation10], %s567
        %s569 = sand.u32 %s185, 1
        %s570 = scalar_lea.sflag [#allocation12], %s569
        %s571 = sand.u32 %s185, 1
        %s572 = smul.addr %s571, 4
        %s573 = scalar_lea.vmem [#allocation11], %s572
        // Predicated region
        $region57: #{tpu_custom_call.1} parent=39 // pred_check
          %p574 = pneg %p169
        $region58: #{tpu_custom_call.1} parent=39 // pred_check_branch
          %576 = sbr.rel (%p574) target = $region60
        $region59: #{tpu_custom_call.1} parent=39 // pred_region
          %s578 = ssub.s32 64, 64
          %579 = vsyncadd %s565, %s578
          %s580 = smul.addr %s31, 64
          %s581 = scalar_lea.hbm %s5, %s580
          %s583 = sshll.u32 %s568, 4
          %s584 = int_to_ptr.vmem [resolvable:$true] %s583
          %586 = dma.vmem_to_hbm [thread:$0]  %s584, 64, %s581, %s565
        $region60: #{tpu_custom_call.1} parent=39 // pred_fallthru
          _
        // Predicated region
        $region61: #{tpu_custom_call.1} parent=39 // pred_check
          %p587 = pneg %p195
        $region62: #{tpu_custom_call.1} parent=39 // pred_check_branch
          %589 = sbr.rel (%p587) target = $region64
        $region63: #{tpu_custom_call.1} parent=39 // pred_region
          %s591 = ssub.s32 64, 64
          %592 = vsyncadd %s570, %s591
          %s593 = smul.addr %s31, 64
          %s594 = scalar_lea.hbm %s6, %s593
          %s596 = sshll.u32 %s573, 4
          %s597 = int_to_ptr.vmem [resolvable:$true] %s596
          %599 = dma.vmem_to_hbm [thread:$0]  %s597, 64, %s594, %s570
        $region64: #{tpu_custom_call.1} parent=39 // pred_fallthru
          _
      $region40: #{tpu_custom_call.1} parent=5 // pred_fallthru
        _
      %p600 = scmp.le.s32.totalorder 2, %s26
      // Predicated region
      $region65: #{tpu_custom_call.1} parent=5 // pred_check
        %p601 = pneg %p600
      $region66: #{tpu_custom_call.1} parent=5 // pred_check_branch
        %603 = sbr.rel (%p601) target = $region68
      $region67: #{tpu_custom_call.1} parent=5 // pred_region
        %s604 = ssub.s32 %s26, 2
        // Predicated region
        $region69: #{tpu_custom_call.1} parent=67 // pred_check
          %p605 = pneg %p175
        $region70: #{tpu_custom_call.1} parent=67 // pred_check_branch
          %607 = sbr.rel (%p605) target = $region72
        $region71: #{tpu_custom_call.1} parent=67 // pred_region
          %s608 = sand.u32 %s160, 1
          %s609 = scalar_lea.sflag [#allocation4], %s608
          %s610 = sand.u32 %s160, 1
          %s611 = smul.addr %s610, 4
          %s612 = scalar_lea.vmem [#allocation10], %s611
          %613 = dma.done %s609, 64
        $region72: #{tpu_custom_call.1} parent=67 // pred_fallthru
          _
        // Predicated region
        $region73: #{tpu_custom_call.1} parent=67 // pred_check
          %p614 = pneg %p201
        $region74: #{tpu_custom_call.1} parent=67 // pred_check_branch
          %616 = sbr.rel (%p614) target = $region76
        $region75: #{tpu_custom_call.1} parent=67 // pred_region
          %s617 = sand.u32 %s186, 1
          %s618 = scalar_lea.sflag [#allocation12], %s617
          %s619 = sand.u32 %s186, 1
          %s620 = smul.addr %s619, 4
          %s621 = scalar_lea.vmem [#allocation11], %s620
          %622 = dma.done %s618, 64
        $region76: #{tpu_custom_call.1} parent=67 // pred_fallthru
          _
      $region68: #{tpu_custom_call.1} parent=5 // pred_fallthru
        _
    $region6: #{tpu_custom_call.1} parent=1 // loop_footer
      %s30 = sadd.s32 1, %s26
    $region7: #{tpu_custom_call.1} parent=1 // loop_footer_branch
      %25 = sbr.rel target = $region3
    $region8: #{tpu_custom_call.1} parent=1 // loop_exit
      _
    %623 = vsyncpa [#allocation3], 1
    %s624 = scalar_lea.sflag [#allocation3], 1
    %625 = vsyncpa %s624, 1
    %626 = vsyncpa [#allocation6], 1
    %s627 = scalar_lea.sflag [#allocation6], 1
    %628 = vsyncpa %s627, 1
    %629 = vsyncpa [#allocation9], 1
    %630 = vsyncpa [#allocation4], 1
    %s631 = scalar_lea.sflag [#allocation4], 1
    %632 = vsyncpa %s631, 1
    %633 = vsyncpa [#allocation12], 1
    %s634 = scalar_lea.sflag [#allocation12], 1
    %635 = vsyncpa %s634, 1

</llo_original>
